<compile_context>
chip_gen: v7x
topology: tpu7x:2x2x1
jax: 0.10.0
libtpu: 0.0.40
codegen_flags: <defaults>
</compile_context>

<pallas_src>
import jax
import jax.numpy as jnp
from jax.experimental import pallas as pl
from jax.experimental.pallas import tpu as pltpu

_MiB = 1024 * 1024
_FOLD_TARGET_BYTES = 512 * 1024   # amortize per-grid-step overhead for tiny slabs
_MAX_FOLD = 64                    # bound the static unroll in the folded kernel


# ---------------------------------------------------------------------------
# Path A: swap of the two minormost dims (in-kernel XLU transpose, tiled).
# ---------------------------------------------------------------------------
def _minor_tile_caps():
    """Per-generation tile caps (elements) for the last-two-dims transpose.

    Both caps are multiples of 128, so partial tiles stay lane/sublane aligned
    (unmasked vst whenever the array is large enough); small arrays fall back to
    full-extent blocks automatically.
    """
    kind = ""
    try:
        kind = jax.devices()[0].device_kind.lower()
    except Exception:
        pass
    if "v6" in kind:
        # 128 MiB physical VMEM: 2048-class tiles + raised scoped limit.
        return 2048, 2048
    # v7x (64 MiB VMEM) / v5e (scoped limit raised explicitly) / unknown: 1024-class.
    return 1024, 1024


def _make_minor_kernel(fold):
    if fold == 1:
        def kernel(x_ref, o_ref):
            o_ref[...] = x_ref[...].T
    else:
        def kernel(x_ref, o_ref):
            for b in range(fold):            # small static unroll over folded leading dim
                o_ref[b] = x_ref[b].T
    return kernel


def _transpose_minor(x):
    *lead, r, c = x.shape
    lead = tuple(lead)
    n_lead = len(lead)
    itemsize = jnp.dtype(x.dtype).itemsize

    tr_cap, tc_cap = _minor_tile_caps()
    tr = r if r <= tr_cap else tr_cap        # full dim, or a multiple of 128
    tc = c if c <= tc_cap else tc_cap
    tile_bytes = tr * tc * itemsize

    # Fold a chunk of the innermost leading dim into the block when slabs are tiny.
    fold = 1
    if n_lead and tile_bytes < _FOLD_TARGET_BYTES:
        fold = int(min(lead[-1], max(1, _FOLD_TARGET_BYTES // tile_bytes), _MAX_FOLD))

    out_shape = jax.ShapeDtypeStruct(lead + (c, r), x.dtype)

    if fold > 1:
        grid = lead[:-1] + (pl.cdiv(lead[-1], fold), pl.cdiv(r, tr), pl.cdiv(c, tc))
        in_block = (None,) * (n_lead - 1) + (fold, tr, tc)
        out_block = (None,) * (n_lead - 1) + (fold, tc, tr)
    else:
        grid = lead + (pl.cdiv(r, tr), pl.cdiv(c, tc))
        in_block = (None,) * n_lead + (tr, tc)
        out_block = (None,) * n_lead + (tc, tr)

    in_map = lambda *g: g
    out_map = lambda *g: g[:-2] + (g[-1], g[-2])

    block_bytes = fold * tile_bytes
    # 2 operands x double-buffering + headroom; explicitly raise the scoped limit
    # (binding default: 16 MiB v5e / 32 MiB v6e,v7x).
    vmem_limit = int(min(100 * _MiB, max(32 * _MiB, 4 * block_bytes + 16 * _MiB)))

    nbytes = x.size * itemsize
    return pl.pallas_call(
        _make_minor_kernel(fold),
        out_shape=out_shape,
        grid=grid,
        in_specs=[pl.BlockSpec(in_block, in_map)],
        out_specs=pl.BlockSpec(out_block, out_map),
        compiler_params=pltpu.CompilerParams(
            dimension_semantics=("parallel",) * len(grid),
            vmem_limit_bytes=vmem_limit),
        cost_estimate=pl.CostEstimate(flops=0, transcendentals=0,
                                      bytes_accessed=2 * nbytes),
    )(x)


# ---------------------------------------------------------------------------
# Path B: swap of two dims, neither of which is the last (lane) dim.
# Pure data movement: one direct HBM->HBM DMA per (d0, d1) index pair covering
# every non-swapped dim at full extent; two DMAs kept in flight.
# ---------------------------------------------------------------------------
def _transpose_leading(x, d0, d1):
    ndim = x.ndim
    shape = x.shape
    out_dims = list(shape)
    out_dims[d0], out_dims[d1] = out_dims[d1], out_dims[d0]
    out_shape = jax.ShapeDtypeStruct(tuple(out_dims), x.dtype)
    n0, n1 = shape[d0], shape[d1]

    def src_idx(p, q):
        return tuple(p if a == d0 else q if a == d1 else slice(None)
                     for a in range(ndim))

    def dst_idx(p, q):
        # out[d0=q, d1=p, rest] = in[d0=p, d1=q, rest]
        return tuple(q if a == d0 else p if a == d1 else slice(None)
                     for a in range(ndim))

    def kernel(src_ref, dst_ref, sem):
        p = pl.program_id(0)
        q = pl.program_id(1)
        nq = pl.num_programs(1)
        step = p * nq + q
        total = pl.num_programs(0) * nq
        slot = step % 2

        cur = pltpu.make_async_copy(src_ref.at[src_idx(p, q)],
                                    dst_ref.at[dst_idx(p, q)],
                                    sem.at[slot])
        cur.start()

        @pl.when(step > 0)
        def _():
            # Previous step's copy has the same byte count; wait on its semaphore.
            pltpu.make_async_copy(src_ref.at[src_idx(p, q)],
                                  dst_ref.at[dst_idx(p, q)],
                                  sem.at[1 - slot]).wait()

        @pl.when(step == total - 1)
        def _():
            cur.wait()

    nbytes = x.size * jnp.dtype(x.dtype).itemsize
    return pl.pallas_call(
        kernel,
        out_shape=out_shape,
        grid=(n0, n1),
        in_specs=[pl.BlockSpec(memory_space=pl.ANY)],
        out_specs=pl.BlockSpec(memory_space=pl.ANY),
        scratch_shapes=[pltpu.SemaphoreType.DMA((2,))],
        compiler_params=pltpu.CompilerParams(
            dimension_semantics=("arbitrary", "arbitrary")),
        cost_estimate=pl.CostEstimate(flops=0, transcendentals=0,
                                      bytes_accessed=2 * nbytes),
    )(x)


# ---------------------------------------------------------------------------
# Dispatcher + module mirror.
# ---------------------------------------------------------------------------
def transpose_pallas(x, dim0, dim1):
    """x.transpose(dim0, dim1) (PyTorch semantics) as a Pallas TPU kernel."""
    ndim = x.ndim
    if ndim < 2:
        return x
    d0, d1 = sorted((dim0 % ndim, dim1 % ndim))
    if d0 == d1:
        return x
    if d0 == ndim - 2 and d1 == ndim - 1:
        return _transpose_minor(x)
    if d1 <= ndim - 2:
        return _transpose_leading(x, d0, d1)
    # TODO(synk): swap of a leading dim with the minormost (lane) dim needs an in-kernel
    # lane<->leading shuffle (or element-granularity DMA); not implemented here.
    raise NotImplementedError(
        f"transpose_pallas: unsupported dim pair {(dim0, dim1)} for rank {ndim}")


class Transpose:
    """Mirror of the PyTorch module: Transpose(*dims, contiguous=False)."""

    def __init__(self, *dims, contiguous=False):
        assert len(dims) == 2, "Transpose expects exactly two dims"
        self.dims = dims
        # `contiguous` is a PyTorch memory-format flag only; the Pallas kernel always
        # materializes a dense array, so the returned values are identical either way.
        self.contiguous = contiguous

    def __call__(self, x):
        return transpose_pallas(x, *self.dims)


if __name__ == "__main__":
    key = jax.random.PRNGKey(0)
    k1, k2, k3 = jax.random.split(key, 3)

    # 1) (batch, seq, hidden): swap of the two minor dims (folded-leading minor path).
    x3 = jax.random.normal(k1, (2, 8, 32), dtype=jnp.float32)
    y = Transpose(1, 2, contiguous=True)(x3)
    jax.block_until_ready(y)
    assert y.shape == (2, 32, 8)
    assert jnp.array_equal(y, jnp.swapaxes(x3, 1, 2))

    # 2) 4-D input, swap of the two minormost (spatial) dims.
    x4 = jax.random.normal(k2, (2, 4, 16, 16), dtype=jnp.float32)
    y = Transpose(2, 3)(x4)
    jax.block_until_ready(y)
    assert y.shape == (2, 4, 16, 16)
    assert jnp.array_equal(y, jnp.swapaxes(x4, 2, 3))

    # 3) Swap of two leading dims (direct HBM->HBM DMA path).
    y = Transpose(0, 1)(x4)
    jax.block_until_ready(y)
    assert y.shape == (4, 2, 16, 16)
    assert jnp.array_equal(y, jnp.swapaxes(x4, 0, 1))

    # 4) Swap of a middle dim with the sublane dim (DMA path with dims before d0 folded in).
    y = Transpose(1, 2)(x4)
    jax.block_until_ready(y)
    assert y.shape == (2, 16, 4, 16)
    assert jnp.array_equal(y, jnp.swapaxes(x4, 1, 2))

    # 5) Plain 2-D matrix transpose (single-tile minor path).
    x2 = jax.random.normal(k3, (8, 128), dtype=jnp.float32)
    y = Transpose(0, 1)(x2)
    jax.block_until_ready(y)
    assert jnp.array_equal(y, x2.T)

    print("KERNEL_OK")
</pallas_src>

<mosaic_0001>
module attributes {stable_mosaic.version = 11 : i64} {
  func.func @kernel(%arg0: i32, %arg1: i32, %arg2: i32, %arg3: memref<2x8x32xf32, #tpu.memory_space<vmem>>, %arg4: memref<2x32x8xf32, #tpu.memory_space<vmem>>) attributes {dimension_semantics = [#tpu.dimension_semantics<parallel>, #tpu.dimension_semantics<parallel>, #tpu.dimension_semantics<parallel>], iteration_bounds = array<i64: 1, 1, 1>, scalar_prefetch = 0 : i64, scratch_operands = 0 : i64, tpu.core_type = #tpu.core_type<tc>, window_params = [{transform_indices = @transform_0, window_bounds = array<i64: 2, 8, 32>}, {transform_indices = @transform_1, window_bounds = array<i64: 2, 32, 8>}]} {
    %c0 = arith.constant 0 : index
    %c0_0 = arith.constant 0 : index
    %c0_1 = arith.constant 0 : index
    %0 = vector.load %arg3[%c0, %c0_0, %c0_1] : memref<2x8x32xf32, #tpu.memory_space<vmem>>, vector<1x8x32xf32>
    %1 = vector.shape_cast %0 : vector<1x8x32xf32> to vector<8x32xf32>
    %2 = tpu.transpose %1, [1, 0] : vector<8x32xf32> -> vector<32x8xf32>
    %c0_2 = arith.constant 0 : index
    %c0_3 = arith.constant 0 : index
    %c0_4 = arith.constant 0 : index
    %3 = vector.load %arg4[%c0_2, %c0_3, %c0_4] : memref<2x32x8xf32, #tpu.memory_space<vmem>>, vector<1x32x8xf32>
    %4 = vector.shape_cast %3 : vector<1x32x8xf32> to vector<32x8xf32>
    %5 = vector.shape_cast %2 : vector<32x8xf32> to vector<1x32x8xf32>
    tpu.vector_store %arg4[%c0_2, %c0_3, %c0_4], %5 {strides = array<i32>} : memref<2x32x8xf32, #tpu.memory_space<vmem>>, vector<1x32x8xf32>,
    %c1 = arith.constant 1 : index
    %c0_5 = arith.constant 0 : index
    %c0_6 = arith.constant 0 : index
    %6 = vector.load %arg3[%c1, %c0_5, %c0_6] : memref<2x8x32xf32, #tpu.memory_space<vmem>>, vector<1x8x32xf32>
    %7 = vector.shape_cast %6 : vector<1x8x32xf32> to vector<8x32xf32>
    %8 = tpu.transpose %7, [1, 0] : vector<8x32xf32> -> vector<32x8xf32>
    %c1_7 = arith.constant 1 : index
    %c0_8 = arith.constant 0 : index
    %c0_9 = arith.constant 0 : index
    %9 = vector.load %arg4[%c1_7, %c0_8, %c0_9] : memref<2x32x8xf32, #tpu.memory_space<vmem>>, vector<1x32x8xf32>
    %10 = vector.shape_cast %9 : vector<1x32x8xf32> to vector<32x8xf32>
    %11 = vector.shape_cast %8 : vector<32x8xf32> to vector<1x32x8xf32>
    tpu.vector_store %arg4[%c1_7, %c0_8, %c0_9], %11 {strides = array<i32>} : memref<2x32x8xf32, #tpu.memory_space<vmem>>, vector<1x32x8xf32>,
    return
  }
  func.func @transform_0(%arg0: i32, %arg1: i32, %arg2: i32) -> (i32, i32, i32) {
    %c0_i32 = arith.constant 0 : i32
    return %arg0, %arg1, %arg2 : i32, i32, i32
  }
  func.func @transform_1(%arg0: i32, %arg1: i32, %arg2: i32) -> (i32, i32, i32) {
    %c0_i32 = arith.constant 0 : i32
    return %arg0, %arg2, %arg1 : i32, i32, i32
  }
}

</mosaic_0001>

<llo_original>
// kernel: tpu_custom_call.1
$region0: #{tpu_custom_call.1}
  #allocation0 [shape = 'u32[]', space=smem, size = 0x4, offset = 0x4, fixed_abs, tag = 'smem constant byte address 0x4 - core index']
  #allocation1 [shape = 'u32[144,128]{1,0:T(1,128)}', space=vmem, size = 0x12000, scoped, tag = 'internal scratch']
  %s0 = inlined_call_operand.hbm [shape: f32[2,8,32], index: 0, kind: input, shape index: {}]
  %s1 = inlined_call_operand.vmem [shape: f32[2,32,8], index: 1, kind: output, shape index: {}]
  %s2 = sld [smem:[#allocation0]]
  $region18: #{tpu_custom_call.1} parent=0
    _
  %s4 = ssub.s32 1, %s2
  %s5 = scalar_select 0, %s4, %s2
  $region1: #{tpu_custom_call.1} parent=0
    #allocation2 [shape = 'u8[8192]{0}', space=vmem, size = 0x2000, scoped, tag = 'input window, operand 0, single buffered']
    #allocation3 [shape = 's32[1]{0}', space=sflag, size = 0x4, scoped, tag = 'scoped memory for tpu_custom_call.1']
    %6 = vsyncpa [#allocation3], 0
    // Predicated region
    $region2: #{tpu_custom_call.1} parent=1 // pred_check
      _
    $region3: #{tpu_custom_call.1} parent=1 // pred_check_branch
      %8 = sbr.rel (0) target = $region5
    $region4: #{tpu_custom_call.1} parent=1 // pred_region
      %s10 = ssub.s32 256, 256
      %11 = vsyncadd [#allocation3], %s10
      %s12 = sshll.u32 [#allocation2], 4
      %s13 = int_to_ptr.vmem [resolvable:$true] %s12
      %18 = dma.hbm_to_vmem [thread:$0]  %s0, 256, %s13, [#allocation3], 128, 128, 8
    $region5: #{tpu_custom_call.1} parent=1 // pred_fallthru
      _
    // Predicated region
    $region6: #{tpu_custom_call.1} parent=1 // pred_check
      _
    $region7: #{tpu_custom_call.1} parent=1 // pred_check_branch
      %20 = sbr.rel (0) target = $region9
    $region8: #{tpu_custom_call.1} parent=1 // pred_region
      %21 = dma.done [#allocation3], 256
    $region9: #{tpu_custom_call.1} parent=1 // pred_fallthru
      _
    %v22 = vld [vmem:[#allocation2] sm:$0xff]
    %23 = vxpose.xlu0.b32.start [1/16] %v22, 128
    %24 = vxpose.xlu0.b32.cont [2/16] 0.0, 128
    %25 = vxpose.xlu0.b32.cont [3/16] 0.0, 128
    %26 = vxpose.xlu0.b32.cont [4/16] 0.0, 128
    %27 = vxpose.xlu0.b32.cont [5/16] 0.0, 128
    %28 = vxpose.xlu0.b32.cont [6/16] 0.0, 128
    %29 = vxpose.xlu0.b32.cont [7/16] 0.0, 128
    %30 = vxpose.xlu0.b32.cont [8/16] 0.0, 128
    %31 = vxpose.xlu0.b32.cont [9/16] 0.0, 128
    %32 = vxpose.xlu0.b32.cont [10/16] 0.0, 128
    %33 = vxpose.xlu0.b32.cont [11/16] 0.0, 128
    %34 = vxpose.xlu0.b32.cont [12/16] 0.0, 128
    %35 = vxpose.xlu0.b32.cont [13/16] 0.0, 128
    %36 = vxpose.xlu0.b32.cont [14/16] 0.0, 128
    %37 = vxpose.xlu0.b32.cont [15/16] 0.0, 128
    %38 = vxpose.xlu0.b32.end [16/16] 0.0, 128
    %v39 = vpop.trf.xlu0
    %v40 = vpop.trf.xlu0
    %v41 = vpop.trf.xlu0
    %v42 = vpop.trf.xlu0
    %v43 = vpop.trf.xlu0
    %v44 = vpop.trf.xlu0
    %v45 = vpop.trf.xlu0
    %v46 = vpop.trf.xlu0
    %v47 = vpop.trf.xlu0
    %v48 = vpop.trf.xlu0
    %v49 = vpop.trf.xlu0
    %v50 = vpop.trf.xlu0
    %v51 = vpop.trf.xlu0
    %v52 = vpop.trf.xlu0
    %v53 = vpop.trf.xlu0
    %v54 = vpop.trf.xlu0
    %vm55 = vcmask 64512
    %56 = vst.msk [vmem:[%s1] sm:$0xff] %vm55, %v39
    %57 = vst.msk [vmem:[%s1 + $0x8] sm:$0xff] %vm55, %v40
    %58 = vst.msk [vmem:[%s1 + $0x10] sm:$0xff] %vm55, %v41
    %59 = vst.msk [vmem:[%s1 + $0x18] sm:$0xff] %vm55, %v42
    %s60 = scalar_lea.vmem [#allocation2], 8
    %v61 = vld [vmem:[%s60] sm:$0xff]
    %62 = vxpose.xlu0.b32.start [1/16] %v61, 128
    %63 = vxpose.xlu0.b32.cont [2/16] 0.0, 128
    %64 = vxpose.xlu0.b32.cont [3/16] 0.0, 128
    %65 = vxpose.xlu0.b32.cont [4/16] 0.0, 128
    %66 = vxpose.xlu0.b32.cont [5/16] 0.0, 128
    %67 = vxpose.xlu0.b32.cont [6/16] 0.0, 128
    %68 = vxpose.xlu0.b32.cont [7/16] 0.0, 128
    %69 = vxpose.xlu0.b32.cont [8/16] 0.0, 128
    %70 = vxpose.xlu0.b32.cont [9/16] 0.0, 128
    %71 = vxpose.xlu0.b32.cont [10/16] 0.0, 128
    %72 = vxpose.xlu0.b32.cont [11/16] 0.0, 128
    %73 = vxpose.xlu0.b32.cont [12/16] 0.0, 128
    %74 = vxpose.xlu0.b32.cont [13/16] 0.0, 128
    %75 = vxpose.xlu0.b32.cont [14/16] 0.0, 128
    %76 = vxpose.xlu0.b32.cont [15/16] 0.0, 128
    %77 = vxpose.xlu0.b32.end [16/16] 0.0, 128
    %v78 = vpop.trf.xlu0
    %v79 = vpop.trf.xlu0
    %v80 = vpop.trf.xlu0
    %v81 = vpop.trf.xlu0
    %v82 = vpop.trf.xlu0
    %v83 = vpop.trf.xlu0
    %v84 = vpop.trf.xlu0
    %v85 = vpop.trf.xlu0
    %v86 = vpop.trf.xlu0
    %v87 = vpop.trf.xlu0
    %v88 = vpop.trf.xlu0
    %v89 = vpop.trf.xlu0
    %v90 = vpop.trf.xlu0
    %v91 = vpop.trf.xlu0
    %v92 = vpop.trf.xlu0
    %v93 = vpop.trf.xlu0
    %s94 = scalar_lea.vmem %s1, 32
    %95 = vst.msk [vmem:[%s94] sm:$0xff] %vm55, %v78
    %96 = vst.msk [vmem:[%s94 + $0x8] sm:$0xff] %vm55, %v79
    %97 = vst.msk [vmem:[%s94 + $0x10] sm:$0xff] %vm55, %v80
    %98 = vst.msk [vmem:[%s94 + $0x18] sm:$0xff] %vm55, %v81
    // Predicated region
    $region10: #{tpu_custom_call.1} parent=1 // pred_check
      _
    $region11: #{tpu_custom_call.1} parent=1 // pred_check_branch
      %100 = sbr.rel (0) target = $region13
    $region12: #{tpu_custom_call.1} parent=1 // pred_region
      _
    $region13: #{tpu_custom_call.1} parent=1 // pred_fallthru
      _
    // Predicated region
    $region14: #{tpu_custom_call.1} parent=1 // pred_check
      _
    $region15: #{tpu_custom_call.1} parent=1 // pred_check_branch
      %102 = sbr.rel (0) target = $region17
    $region16: #{tpu_custom_call.1} parent=1 // pred_region
      _
    $region17: #{tpu_custom_call.1} parent=1 // pred_fallthru
      _
    %103 = vsyncpa [#allocation3], 1

</llo_original>
